<compile_context>
chip_gen: v7x
topology: tpu7x:2x2x1
jax: 0.10.0
libtpu: 0.0.40
codegen_flags: <defaults>
</compile_context>

<pallas_src>
import functools

import jax
import jax.numpy as jnp
from jax.experimental import pallas as pl
from jax.experimental.pallas import tpu as pltpu


# ---------------------------------------------------------------------------
# VMEM budgeting helpers.
# ---------------------------------------------------------------------------
@functools.lru_cache(maxsize=1)
def _vmem_capacity_bytes():
    try:
        cap = getattr(pltpu.get_tpu_info(), "vmem_capacity_bytes", None)
        if cap:
            return int(cap)
    except Exception:
        pass
    return 64 * 1024 * 1024          # conservative fallback (v7x per-TensorCore)


def _vmem_budget_bytes():
    # ~75% of physical VMEM: headroom for compiler-internal scratch, never the
    # full 64 MiB on v7x, and up to ~96 MiB on v5e/v6e (128 MiB physical).
    return int(_vmem_capacity_bytes() * 3 // 4)


def _step_bytes(c, lanes, itemsize):
    """Live VMEM for one (C, lanes) step of the apply / fused kernel."""
    io = 2 * 2 * c * lanes * itemsize      # x + out tiles, double-buffered
    ws = 2 * c * c * itemsize              # sSE weight (default double buffer)
    f32_tmp = 2 * c * lanes * 4            # sigmoid logits + scale live in f32
    return io + ws + f32_tmp + (1 << 20)   # + slack for the tiny cSE operands


def _round_up(v, m):
    return (v + m - 1) // m * m


# ---------------------------------------------------------------------------
# Fused single-pass kernel: pool + cSE MLP + sSE conv + combine, grid=(N,).
# ---------------------------------------------------------------------------
def _scse_fused_kernel(x_ref, w1_ref, b1_ref, w2_ref, b2_ref, ws_ref, bs_ref,
                       o_ref, *, inv_hw, bf16_mxu):
    x = x_ref[...]                                                 # (C, HW)
    # Global average pool as an MXU ones-matmul (keeps the XLU free), f32 acc.
    ones = jnp.ones((x.shape[1], 1), x.dtype)
    pooled = jnp.dot(x, ones, preferred_element_type=jnp.float32) * inv_hw
    # Tiny cSE MLP -> per-channel gate (C, 1); negligible flops, kept f32.
    z = jnp.dot(w1_ref[...], pooled,
                preferred_element_type=jnp.float32) + b1_ref[...]
    z = jnp.maximum(z, 0.0)
    gate = jax.nn.sigmoid(
        jnp.dot(w2_ref[...], z, preferred_element_type=jnp.float32) + b2_ref[...])
    # sSE 1x1 conv + sigmoid (f32 accumulation / activation).
    ws, rhs = ws_ref[...], x
    if bf16_mxu:                     # optional: v5e / huge-C f32-storage path
        ws, rhs = ws.astype(jnp.bfloat16), rhs.astype(jnp.bfloat16)
    s = jax.nn.sigmoid(
        jnp.dot(ws, rhs, preferred_element_type=jnp.float32) + bs_ref[...])
    # Fused combine x * (cSE + sSE); tail runs in the storage dtype
    # (native bf16 VPU on v6e/v7x, legalized to f32 on v5e).
    scale = gate + s                                               # (C, HW) f32
    o_ref[...] = (x * scale.astype(x.dtype)).astype(o_ref.dtype)


# ---------------------------------------------------------------------------
# Two-pass fallback, pass 1: HW-tiled partial sums of the global average pool.
# Grid (N, P, nh_per); the (C, 1) f32 output block is resident across the last
# ("arbitrary") axis and doubles as the accumulator.
# ---------------------------------------------------------------------------
def _pool_partial_kernel(x_ref, psum_ref, *, thw, hw, nh_per):
    p = pl.program_id(1)
    t = pl.program_id(2)

    @pl.when(t == 0)
    def _init():
        psum_ref[...] = jnp.zeros_like(psum_ref)

    x = x_ref[...]                                                 # (C, thw)
    # Mask the ragged last HW tile so the global sum (and mean) stays exact.
    blk = p * nh_per + t
    col = jax.lax.broadcasted_iota(jnp.int32, x.shape, 1)
    x = jnp.where(col < hw - blk * thw, x, jnp.zeros_like(x))
    ones = jnp.ones((x.shape[1], 1), x.dtype)
    psum_ref[...] += jnp.dot(x, ones, preferred_element_type=jnp.float32)


# ---------------------------------------------------------------------------
# Two-pass fallback, pass 2: sSE 1x1 conv + fused combine x * (cSE + sSE).
# Grid (N, n_hw), both axes independent -> fully pipelined / megacore-able.
# ---------------------------------------------------------------------------
def _scse_apply_kernel(gate_ref, x_ref, ws_ref, bs_ref, o_ref, *, bf16_mxu):
    x = x_ref[...]                                                 # (C, thw)
    ws, rhs = ws_ref[...], x
    if bf16_mxu:
        ws, rhs = ws.astype(jnp.bfloat16), rhs.astype(jnp.bfloat16)
    s = jax.nn.sigmoid(
        jnp.dot(ws, rhs, preferred_element_type=jnp.float32) + bs_ref[...])
    scale = gate_ref[...] + s                                      # (C,1)+(C,thw)
    # Ragged tail columns (if any) are column-local garbage; their stores are
    # dropped by Pallas, so no masking is needed here.
    o_ref[...] = (x * scale.astype(x.dtype)).astype(o_ref.dtype)


# ---------------------------------------------------------------------------
# Wrapper / dispatch.
# ---------------------------------------------------------------------------
@functools.partial(
    jax.jit, static_argnames=("compute_dtype", "max_hw_tile", "matmul_in_bf16"))
def scse_forward(x_nchw, params, compute_dtype=jnp.float32, max_hw_tile=8192,
                 matmul_in_bf16=False):
    """SCSE forward. x_nchw: (N, C, H, W) f32 -> (N, C, H, W) compute_dtype."""
    w1, b1, w2, b2, ws, bs = params
    N, C, H, W = x_nchw.shape
    HW = H * W
    Cmid = w1.shape[0]
    itemsize = jnp.dtype(compute_dtype).itemsize
    budget = _vmem_budget_bytes()

    # (N, C, H, W) -> (N, C, HW): pure reshape, no transpose / extra HBM pass.
    x = x_nchw.reshape(N, C, HW).astype(compute_dtype)
    ws_c = ws.astype(compute_dtype)
    # cSE weights / all biases stay f32 (tiny; keeps the gate math exact).
    bf16_mxu = bool(matmul_in_bf16) and compute_dtype != jnp.bfloat16

    # ---- fused single-pass path (one HBM read of x, one write) -------------
    if HW <= max_hw_tile and _step_bytes(C, HW, itemsize) <= budget:
        out = pl.pallas_call(
            functools.partial(_scse_fused_kernel, inv_hw=1.0 / HW,
                              bf16_mxu=bf16_mxu),
            out_shape=jax.ShapeDtypeStruct((N, C, HW), compute_dtype),
            grid_spec=pltpu.PrefetchScalarGridSpec(
                num_scalar_prefetch=0,
                grid=(N,),
                in_specs=[
                    pl.BlockSpec((None, C, HW), lambda b: (b, 0, 0)),   # x
                    pl.BlockSpec((Cmid, C), lambda b: (0, 0)),          # w1
                    pl.BlockSpec((Cmid, 1), lambda b: (0, 0)),          # b1
                    pl.BlockSpec((C, Cmid), lambda b: (0, 0)),          # w2
                    pl.BlockSpec((C, 1), lambda b: (0, 0)),             # b2
                    pl.BlockSpec((C, C), lambda b: (0, 0)),             # ws
                    pl.BlockSpec((C, 1), lambda b: (0, 0)),             # bs
                ],
                out_specs=pl.BlockSpec((None, C, HW), lambda b: (b, 0, 0)),
            ),
            compiler_params=pltpu.CompilerParams(
                dimension_semantics=("parallel",),
                vmem_limit_bytes=budget),
        )(x, w1, b1, w2, b2, ws_c, bs)
        return out.reshape(N, C, H, W)

    # ---- two-pass fallback (oversized feature maps) -------------------------
    # Largest lane-aligned HW tile that fits the budget (keeps thw >= 128).
    thw = max(128, min(_round_up(HW, 128), _round_up(max_hw_tile, 128)))
    thw -= thw % 128
    while thw > 128 and _step_bytes(C, thw, itemsize) > budget:
        thw -= 128
    n_hw = pl.cdiv(HW, thw)
    # Megacore-shard the pool over two HW halves (matters on v7x at N=1).
    P = 2 if (n_hw % 2 == 0 and n_hw >= 2) else 1
    nh_per = n_hw // P

    # pass 1: partial pool sums, f32, flat (N*P, C, 1) so the accumulator block
    # is resident across the reduction ("arbitrary") axis.
    psum = pl.pallas_call(
        functools.partial(_pool_partial_kernel, thw=thw, hw=HW, nh_per=nh_per),
        out_shape=jax.ShapeDtypeStruct((N * P, C, 1), jnp.float32),
        grid_spec=pltpu.PrefetchScalarGridSpec(
            num_scalar_prefetch=0,
            grid=(N, P, nh_per),
            in_specs=[
                pl.BlockSpec((None, C, thw),
                             lambda b, p, t: (b, 0, p * nh_per + t)),
            ],
            out_specs=pl.BlockSpec((None, C, 1),
                                   lambda b, p, t: (b * P + p, 0, 0)),
        ),
        compiler_params=pltpu.CompilerParams(
            dimension_semantics=("parallel", "parallel", "arbitrary"),
            vmem_limit_bytes=budget),
    )(x)

    # Tiny cSE MLP on the (N, C) means: negligible work, done in plain JAX/f32.
    pooled = psum.reshape(N, P, C).sum(axis=1) * (1.0 / HW)        # (N, C)
    z = jnp.maximum(pooled @ w1.T + b1[:, 0], 0.0)                 # (N, Cmid)
    gate = jax.nn.sigmoid(z @ w2.T + b2[:, 0])[:, :, None]         # (N, C, 1)

    # pass 2: sSE + fused combine.
    out = pl.pallas_call(
        functools.partial(_scse_apply_kernel, bf16_mxu=bf16_mxu),
        out_shape=jax.ShapeDtypeStruct((N, C, HW), compute_dtype),
        grid_spec=pltpu.PrefetchScalarGridSpec(
            num_scalar_prefetch=0,
            grid=(N, n_hw),
            in_specs=[
                pl.BlockSpec((None, C, 1), lambda b, t: (b, 0, 0)),     # gate
                pl.BlockSpec((None, C, thw), lambda b, t: (b, 0, t)),   # x
                pl.BlockSpec((C, C), lambda b, t: (0, 0)),              # ws
                pl.BlockSpec((C, 1), lambda b, t: (0, 0)),              # bs
            ],
            out_specs=pl.BlockSpec((None, C, thw), lambda b, t: (b, 0, t)),
        ),
        compiler_params=pltpu.CompilerParams(
            dimension_semantics=("parallel", "parallel"),
            vmem_limit_bytes=budget),
    )(gate, x, ws_c, bs)

    return out.reshape(N, C, H, W)


# ---------------------------------------------------------------------------
# Synthetic params + pure-JAX reference.
# ---------------------------------------------------------------------------
def init_params(key, ch, re=16):
    """Deterministic synthetic params, stored in PyTorch (out, in) orientation."""
    cmid = max(ch // re, 1)
    k1, k2, k3, k4, k5, k6 = jax.random.split(key, 6)
    w1 = jax.random.normal(k1, (cmid, ch), jnp.float32) * 0.1   # conv1: ch -> ch//re
    b1 = jax.random.normal(k2, (cmid, 1), jnp.float32) * 0.1
    w2 = jax.random.normal(k3, (ch, cmid), jnp.float32) * 0.1   # conv2: ch//re -> ch
    b2 = jax.random.normal(k4, (ch, 1), jnp.float32) * 0.1
    ws = jax.random.normal(k5, (ch, ch), jnp.float32) * 0.1     # sSE conv: ch -> ch
    bs = jax.random.normal(k6, (ch, 1), jnp.float32) * 0.1
    return w1, b1, w2, b2, ws, bs


def scse_reference(x_nchw, params):
    """Pure-JAX reference matching the PyTorch module semantics (NCHW, f32)."""
    w1, b1, w2, b2, ws, bs = params
    pooled = jnp.mean(x_nchw, axis=(2, 3))                      # (N, C)
    z = jnp.maximum(pooled @ w1.T + b1[:, 0], 0.0)              # (N, Cmid)
    g = jax.nn.sigmoid(z @ w2.T + b2[:, 0])                     # (N, C)
    s = jax.nn.sigmoid(jnp.einsum('oc,nchw->nohw', ws, x_nchw)
                       + bs[:, 0][None, :, None, None])
    return x_nchw * g[:, :, None, None] + x_nchw * s


if __name__ == "__main__":
    key = jax.random.PRNGKey(0)
    kx, kp = jax.random.split(key)

    N, C, H, W = 2, 32, 16, 16          # ch=32, re=16 -> ch//re = 2
    x = jax.random.normal(kx, (N, C, H, W), jnp.float32)
    params = init_params(kp, C, re=16)

    ref = scse_reference(x, params)

    # Fused single-pass path (the common case), f32 storage.
    out = jax.block_until_ready(scse_forward(x, params, compute_dtype=jnp.float32))
    assert out.shape == (N, C, H, W)
    assert jnp.allclose(out, ref, atol=5e-4, rtol=5e-4), "fused f32 mismatch"

    # Two-pass fallback path (forced via a small HW tile cap), f32 storage.
    out_2p = jax.block_until_ready(
        scse_forward(x, params, compute_dtype=jnp.float32, max_hw_tile=128))
    assert jnp.allclose(out_2p, ref, atol=5e-4, rtol=5e-4), "two-pass f32 mismatch"

    # bf16 storage path (halves HBM traffic on every generation; f32 accumulation
    # inside the kernels).
    out_bf16 = jax.block_until_ready(
        scse_forward(x, params, compute_dtype=jnp.bfloat16))
    assert jnp.allclose(out_bf16.astype(jnp.float32), ref, atol=5e-2, rtol=5e-2), \
        "bf16 mismatch"

    # f32 storage with bf16 MXU operands (v5e / very-large-C option).
    out_mx = jax.block_until_ready(
        scse_forward(x, params, compute_dtype=jnp.float32, matmul_in_bf16=True))
    assert jnp.allclose(out_mx, ref, atol=5e-2, rtol=5e-2), "bf16-MXU mismatch"

    print("KERNEL_OK")
</pallas_src>

<mosaic_0001>
module attributes {stable_mosaic.version = 11 : i64} {
  func.func @_scse_fused_kernel(%arg0: i32, %arg1: memref<1x32x256xf32, #tpu.memory_space<vmem>>, %arg2: memref<2x32xf32, #tpu.memory_space<vmem>>, %arg3: memref<2x1xf32, #tpu.memory_space<vmem>>, %arg4: memref<32x2xf32, #tpu.memory_space<vmem>>, %arg5: memref<32x1xf32, #tpu.memory_space<vmem>>, %arg6: memref<32x32xf32, #tpu.memory_space<vmem>>, %arg7: memref<32x1xf32, #tpu.memory_space<vmem>>, %arg8: memref<1x32x256xf32, #tpu.memory_space<vmem>>) attributes {dimension_semantics = [#tpu.dimension_semantics<parallel>], iteration_bounds = array<i64: 2>, scalar_prefetch = 0 : i64, scratch_operands = 0 : i64, tpu.core_type = #tpu.core_type<tc>, window_params = [{transform_indices = @transform_0, window_bounds = array<i64: 1, 32, 256>}, {pipeline_mode = #tpu.pipeline_mode<synchronous>, transform_indices = @transform_1, window_bounds = array<i64: 2, 32>}, {pipeline_mode = #tpu.pipeline_mode<synchronous>, transform_indices = @transform_2, window_bounds = array<i64: 2, 1>}, {pipeline_mode = #tpu.pipeline_mode<synchronous>, transform_indices = @transform_3, window_bounds = array<i64: 32, 2>}, {pipeline_mode = #tpu.pipeline_mode<synchronous>, transform_indices = @transform_4, window_bounds = array<i64: 32, 1>}, {pipeline_mode = #tpu.pipeline_mode<synchronous>, transform_indices = @transform_5, window_bounds = array<i64: 32, 32>}, {pipeline_mode = #tpu.pipeline_mode<synchronous>, transform_indices = @transform_6, window_bounds = array<i64: 32, 1>}, {transform_indices = @transform_7, window_bounds = array<i64: 1, 32, 256>}]} {
    %c0 = arith.constant 0 : index
    %c0_0 = arith.constant 0 : index
    %c0_1 = arith.constant 0 : index
    %0 = vector.load %arg1[%c0, %c0_0, %c0_1] : memref<1x32x256xf32, #tpu.memory_space<vmem>>, vector<1x32x256xf32>
    %1 = vector.shape_cast %0 : vector<1x32x256xf32> to vector<32x256xf32>
    %cst = arith.constant 1.000000e+00 : f32
    %2 = vector.broadcast %cst : f32 to vector<256x1xf32>
    %cst_2 = arith.constant dense<0.000000e+00> : vector<32x1xf32>
    %3 = tpu.matmul %1, %2, %cst_2 {dimension_numbers = #tpu.dot_dimension_numbers<[1], [0], [0], [1], [0, 0, 1, 1], [], []>} : vector<32x256xf32>, vector<256x1xf32>, vector<32x1xf32> -> vector<32x1xf32>
    %cst_3 = arith.constant 3.906250e-03 : f32
    %4 = vector.broadcast %cst_3 : f32 to vector<32x1xf32>
    %5 = arith.mulf %3, %4 : vector<32x1xf32>
    %c0_4 = arith.constant 0 : index
    %c0_5 = arith.constant 0 : index
    %6 = vector.load %arg2[%c0_4, %c0_5] : memref<2x32xf32, #tpu.memory_space<vmem>>, vector<2x32xf32>
    %cst_6 = arith.constant dense<0.000000e+00> : vector<2x1xf32>
    %7 = tpu.matmul %6, %5, %cst_6 {dimension_numbers = #tpu.dot_dimension_numbers<[1], [0], [0], [1], [0, 0, 1, 1], [], []>} : vector<2x32xf32>, vector<32x1xf32>, vector<2x1xf32> -> vector<2x1xf32>
    %c0_7 = arith.constant 0 : index
    %c0_8 = arith.constant 0 : index
    %8 = vector.load %arg3[%c0_7, %c0_8] : memref<2x1xf32, #tpu.memory_space<vmem>>, vector<2x1xf32>
    %9 = arith.addf %7, %8 : vector<2x1xf32>
    %cst_9 = arith.constant 0.000000e+00 : f32
    %10 = vector.broadcast %cst_9 : f32 to vector<2x1xf32>
    %11 = arith.maximumf %9, %10 : vector<2x1xf32>
    %c0_10 = arith.constant 0 : index
    %c0_11 = arith.constant 0 : index
    %12 = vector.load %arg4[%c0_10, %c0_11] : memref<32x2xf32, #tpu.memory_space<vmem>>, vector<32x2xf32>
    %cst_12 = arith.constant dense<0.000000e+00> : vector<32x1xf32>
    %13 = tpu.matmul %12, %11, %cst_12 {dimension_numbers = #tpu.dot_dimension_numbers<[1], [0], [0], [1], [0, 0, 1, 1], [], []>} : vector<32x2xf32>, vector<2x1xf32>, vector<32x1xf32> -> vector<32x1xf32>
    %c0_13 = arith.constant 0 : index
    %c0_14 = arith.constant 0 : index
    %14 = vector.load %arg5[%c0_13, %c0_14] : memref<32x1xf32, #tpu.memory_space<vmem>>, vector<32x1xf32>
    %15 = arith.addf %13, %14 : vector<32x1xf32>
    %16 = arith.negf %15 : vector<32x1xf32>
    %17 = math.exp %16 : vector<32x1xf32>
    %cst_15 = arith.constant 1.000000e+00 : f32
    %18 = vector.broadcast %cst_15 : f32 to vector<32x1xf32>
    %19 = arith.addf %18, %17 : vector<32x1xf32>
    %20 = arith.divf %18, %19 : vector<32x1xf32>
    %c0_16 = arith.constant 0 : index
    %c0_17 = arith.constant 0 : index
    %21 = vector.load %arg6[%c0_16, %c0_17] : memref<32x32xf32, #tpu.memory_space<vmem>>, vector<32x32xf32>
    %cst_18 = arith.constant dense<0.000000e+00> : vector<32x256xf32>
    %22 = tpu.matmul %21, %1, %cst_18 {dimension_numbers = #tpu.dot_dimension_numbers<[1], [0], [0], [1], [0, 0, 1, 1], [], []>} : vector<32x32xf32>, vector<32x256xf32>, vector<32x256xf32> -> vector<32x256xf32>
    %c0_19 = arith.constant 0 : index
    %c0_20 = arith.constant 0 : index
    %23 = vector.load %arg7[%c0_19, %c0_20] : memref<32x1xf32, #tpu.memory_space<vmem>>, vector<32x1xf32>
    %24 = vector.broadcast %23 : vector<32x1xf32> to vector<32x256xf32>
    %25 = arith.addf %22, %24 : vector<32x256xf32>
    %26 = arith.negf %25 : vector<32x256xf32>
    %27 = math.exp %26 : vector<32x256xf32>
    %cst_21 = arith.constant 1.000000e+00 : f32
    %28 = vector.broadcast %cst_21 : f32 to vector<32x256xf32>
    %29 = arith.addf %28, %27 : vector<32x256xf32>
    %30 = arith.divf %28, %29 : vector<32x256xf32>
    %31 = vector.broadcast %20 : vector<32x1xf32> to vector<32x256xf32>
    %32 = arith.addf %31, %30 : vector<32x256xf32>
    %33 = arith.mulf %1, %32 : vector<32x256xf32>
    %c0_22 = arith.constant 0 : index
    %c0_23 = arith.constant 0 : index
    %c0_24 = arith.constant 0 : index
    %34 = vector.load %arg8[%c0_22, %c0_23, %c0_24] : memref<1x32x256xf32, #tpu.memory_space<vmem>>, vector<1x32x256xf32>
    %35 = vector.shape_cast %34 : vector<1x32x256xf32> to vector<32x256xf32>
    %36 = vector.shape_cast %33 : vector<32x256xf32> to vector<1x32x256xf32>
    tpu.vector_store %arg8[%c0_22, %c0_23, %c0_24], %36 {strides = array<i32>} : memref<1x32x256xf32, #tpu.memory_space<vmem>>, vector<1x32x256xf32>,
    return
  }
  func.func @transform_0(%arg0: i32) -> (i32, i32, i32) {
    %c0_i32 = arith.constant 0 : i32
    %c0_i32_0 = arith.constant 0 : i32
    %c0_i32_1 = arith.constant 0 : i32
    return %arg0, %c0_i32, %c0_i32_0 : i32, i32, i32
  }
  func.func @transform_1(%arg0: i32) -> (i32, i32) {
    %c0_i32 = arith.constant 0 : i32
    %c0_i32_0 = arith.constant 0 : i32
    %c0_i32_1 = arith.constant 0 : i32
    return %c0_i32, %c0_i32_0 : i32, i32
  }
  func.func @transform_2(%arg0: i32) -> (i32, i32) {
    %c0_i32 = arith.constant 0 : i32
    %c0_i32_0 = arith.constant 0 : i32
    %c0_i32_1 = arith.constant 0 : i32
    return %c0_i32, %c0_i32_0 : i32, i32
  }
  func.func @transform_3(%arg0: i32) -> (i32, i32) {
    %c0_i32 = arith.constant 0 : i32
    %c0_i32_0 = arith.constant 0 : i32
    %c0_i32_1 = arith.constant 0 : i32
    return %c0_i32, %c0_i32_0 : i32, i32
  }
  func.func @transform_4(%arg0: i32) -> (i32, i32) {
    %c0_i32 = arith.constant 0 : i32
    %c0_i32_0 = arith.constant 0 : i32
    %c0_i32_1 = arith.constant 0 : i32
    return %c0_i32, %c0_i32_0 : i32, i32
  }
  func.func @transform_5(%arg0: i32) -> (i32, i32) {
    %c0_i32 = arith.constant 0 : i32
    %c0_i32_0 = arith.constant 0 : i32
    %c0_i32_1 = arith.constant 0 : i32
    return %c0_i32, %c0_i32_0 : i32, i32
  }
  func.func @transform_6(%arg0: i32) -> (i32, i32) {
    %c0_i32 = arith.constant 0 : i32
    %c0_i32_0 = arith.constant 0 : i32
    %c0_i32_1 = arith.constant 0 : i32
    return %c0_i32, %c0_i32_0 : i32, i32
  }
  func.func @transform_7(%arg0: i32) -> (i32, i32, i32) {
    %c0_i32 = arith.constant 0 : i32
    %c0_i32_0 = arith.constant 0 : i32
    %c0_i32_1 = arith.constant 0 : i32
    return %arg0, %c0_i32, %c0_i32_0 : i32, i32, i32
  }
}

</mosaic_0001>

<llo_original>
// kernel: scse_forward.1
$region0: #{scse_forward.1}
  #allocation0 [shape = 'u32[]', space=smem, size = 0x4, offset = 0x4, fixed_abs, tag = 'smem constant byte address 0x4 - core index']
  #allocation1 [shape = 'u32[144,128]{1,0:T(1,128)}', space=vmem, size = 0x12000, scoped, tag = 'internal scratch']
  %s0 = inlined_call_operand.vmem [shape: f32[2,32,256], index: 0, kind: input, shape index: {}]
  %s1 = inlined_call_operand.vmem [shape: f32[2,32], index: 1, kind: input, shape index: {}]
  %s2 = inlined_call_operand.vmem [shape: f32[2,1], index: 2, kind: input, shape index: {}]
  %s3 = inlined_call_operand.vmem [shape: f32[32,2], index: 3, kind: input, shape index: {}]
  %s4 = inlined_call_operand.vmem [shape: f32[32,1], index: 4, kind: input, shape index: {}]
  %s5 = inlined_call_operand.vmem [shape: f32[32,32], index: 5, kind: input, shape index: {}]
  %s6 = inlined_call_operand.vmem [shape: f32[32,1], index: 6, kind: input, shape index: {}]
  %s7 = inlined_call_operand.vmem [shape: f32[2,32,256], index: 7, kind: output, shape index: {}]
  %s8 = sld [smem:[#allocation0]]
  $region61: #{scse_forward.1} parent=0
    _
  %s10 = ssub.s32 1, %s8
  %s11 = scalar_select 0, %s10, %s8
  loop: start=0, step=1, limit=4
  $region2: #{scse_forward.1} parent=0 // loop_pre_header
    _
  $region3: #{scse_forward.1} parent=0 // loop_header
    %s13 = sphi 0, %s17
    %p14 = scmp.ge.s32.totalorder %s13, 4
    %s23 = sphi 0, %s25
    %s26 = sphi 0, %s23
    %s27 = sphi 0, %s26
    %s43 = sphi 0, %s27
    %s47 = sphi 0, %s47
    %s49 = sphi 0, %s47
    %s50 = sphi 0, %s49
    %s64 = sphi 0, %s50
    %s68 = sphi 0, %s68
    %s70 = sphi 0, %s68
    %s71 = sphi 0, %s70
    %s85 = sphi 0, %s71
    %s89 = sphi 0, %s89
    %s91 = sphi 0, %s89
    %s92 = sphi 0, %s91
    %s106 = sphi 0, %s92
    %s110 = sphi 0, %s110
    %s112 = sphi 0, %s110
    %s113 = sphi 0, %s112
    %s127 = sphi 0, %s113
    %s131 = sphi 0, %s131
    %s133 = sphi 0, %s131
    %s134 = sphi 0, %s133
    %s148 = sphi 0, %s134
    %s152 = sphi 0, %s152
    %s154 = sphi 0, %s152
    %s155 = sphi 0, %s154
    %s169 = sphi 0, %s155
    %s175 = sphi 0, %s177
    %s178 = sphi 0, %s175
    %s179 = sphi 0, %s178
    %s195 = sphi 0, %s179
  $region4: #{scse_forward.1} parent=0 // loop_header_branch
    %16 = sbr.rel (%p14) target = $region8
  $region5: #{scse_forward.1} parent=0 // loop_body
    %s18 = ssub.s32 %s13, 1
    %s19 = ssub.s32 %s13, 2
    %s20 = sadd.s32 %s13, 1
    %s21 = ssub.s32 %s13, %s20
    %p22 = scmp.eq.s32.totalorder %s21, 0
    %s24 = sadd.s32 %s23, 1
    %s25 = scalar_select %p22, %s23, %s24
    %p28 = pneg %p22
    %p29 = scmp.eq.s32.totalorder %s13, 1
    %p30 = por %p28, %p29
    %p31 = scmp.ne.s32.totalorder %s23, %s26
    %p32 = scmp.eq.s32.totalorder %s13, 0
    %p33 = por %p31, %p32
    %p34 = scmp.ne.s32.totalorder %s23, %s26
    %p35 = scmp.eq.s32.totalorder %s18, 1
    %p36 = por %p34, %p35
    %p37 = scmp.ne.s32.totalorder %s26, %s27
    %p38 = scmp.eq.s32.totalorder %s18, 0
    %p39 = por %p37, %p38
    %p40 = scmp.ne.s32.totalorder %s26, %s27
    %p41 = scmp.eq.s32.totalorder %s19, 1
    %p42 = por %p40, %p41
    %p44 = scmp.ne.s32.totalorder %s27, %s43
    %p45 = scmp.eq.s32.totalorder %s19, 0
    %p46 = por %p44, %p45
    %s48 = sadd.s32 %s47, 1
    %p51 = scmp.eq.s32.totalorder %s13, 1
    %p52 = scmp.ne.s32.totalorder %s47, %s49
    %p53 = scmp.eq.s32.totalorder %s13, 0
    %p54 = por %p52, %p53
    %p55 = scmp.ne.s32.totalorder %s47, %s49
    %p56 = scmp.eq.s32.totalorder %s18, 1
    %p57 = por %p55, %p56
    %p58 = scmp.ne.s32.totalorder %s49, %s50
    %p59 = scmp.eq.s32.totalorder %s18, 0
    %p60 = por %p58, %p59
    %p61 = scmp.ne.s32.totalorder %s49, %s50
    %p62 = scmp.eq.s32.totalorder %s19, 1
    %p63 = por %p61, %p62
    %p65 = scmp.ne.s32.totalorder %s50, %s64
    %p66 = scmp.eq.s32.totalorder %s19, 0
    %p67 = por %p65, %p66
    %s69 = sadd.s32 %s68, 1
    %p72 = scmp.eq.s32.totalorder %s13, 1
    %p73 = scmp.ne.s32.totalorder %s68, %s70
    %p74 = scmp.eq.s32.totalorder %s13, 0
    %p75 = por %p73, %p74
    %p76 = scmp.ne.s32.totalorder %s68, %s70
    %p77 = scmp.eq.s32.totalorder %s18, 1
    %p78 = por %p76, %p77
    %p79 = scmp.ne.s32.totalorder %s70, %s71
    %p80 = scmp.eq.s32.totalorder %s18, 0
    %p81 = por %p79, %p80
    %p82 = scmp.ne.s32.totalorder %s70, %s71
    %p83 = scmp.eq.s32.totalorder %s19, 1
    %p84 = por %p82, %p83
    %p86 = scmp.ne.s32.totalorder %s71, %s85
    %p87 = scmp.eq.s32.totalorder %s19, 0
    %p88 = por %p86, %p87
    %s90 = sadd.s32 %s89, 1
    %p93 = scmp.eq.s32.totalorder %s13, 1
    %p94 = scmp.ne.s32.totalorder %s89, %s91
    %p95 = scmp.eq.s32.totalorder %s13, 0
    %p96 = por %p94, %p95
    %p97 = scmp.ne.s32.totalorder %s89, %s91
    %p98 = scmp.eq.s32.totalorder %s18, 1
    %p99 = por %p97, %p98
    %p100 = scmp.ne.s32.totalorder %s91, %s92
    %p101 = scmp.eq.s32.totalorder %s18, 0
    %p102 = por %p100, %p101
    %p103 = scmp.ne.s32.totalorder %s91, %s92
    %p104 = scmp.eq.s32.totalorder %s19, 1
    %p105 = por %p103, %p104
    %p107 = scmp.ne.s32.totalorder %s92, %s106
    %p108 = scmp.eq.s32.totalorder %s19, 0
    %p109 = por %p107, %p108
    %s111 = sadd.s32 %s110, 1
    %p114 = scmp.eq.s32.totalorder %s13, 1
    %p115 = scmp.ne.s32.totalorder %s110, %s112
    %p116 = scmp.eq.s32.totalorder %s13, 0
    %p117 = por %p115, %p116
    %p118 = scmp.ne.s32.totalorder %s110, %s112
    %p119 = scmp.eq.s32.totalorder %s18, 1
    %p120 = por %p118, %p119
    %p121 = scmp.ne.s32.totalorder %s112, %s113
    %p122 = scmp.eq.s32.totalorder %s18, 0
    %p123 = por %p121, %p122
    %p124 = scmp.ne.s32.totalorder %s112, %s113
    %p125 = scmp.eq.s32.totalorder %s19, 1
    %p126 = por %p124, %p125
    %p128 = scmp.ne.s32.totalorder %s113, %s127
    %p129 = scmp.eq.s32.totalorder %s19, 0
    %p130 = por %p128, %p129
    %s132 = sadd.s32 %s131, 1
    %p135 = scmp.eq.s32.totalorder %s13, 1
    %p136 = scmp.ne.s32.totalorder %s131, %s133
    %p137 = scmp.eq.s32.totalorder %s13, 0
    %p138 = por %p136, %p137
    %p139 = scmp.ne.s32.totalorder %s131, %s133
    %p140 = scmp.eq.s32.totalorder %s18, 1
    %p141 = por %p139, %p140
    %p142 = scmp.ne.s32.totalorder %s133, %s134
    %p143 = scmp.eq.s32.totalorder %s18, 0
    %p144 = por %p142, %p143
    %p145 = scmp.ne.s32.totalorder %s133, %s134
    %p146 = scmp.eq.s32.totalorder %s19, 1
    %p147 = por %p145, %p146
    %p149 = scmp.ne.s32.totalorder %s134, %s148
    %p150 = scmp.eq.s32.totalorder %s19, 0
    %p151 = por %p149, %p150
    %s153 = sadd.s32 %s152, 1
    %p156 = scmp.eq.s32.totalorder %s13, 1
    %p157 = scmp.ne.s32.totalorder %s152, %s154
    %p158 = scmp.eq.s32.totalorder %s13, 0
    %p159 = por %p157, %p158
    %p160 = scmp.ne.s32.totalorder %s152, %s154
    %p161 = scmp.eq.s32.totalorder %s18, 1
    %p162 = por %p160, %p161
    %p163 = scmp.ne.s32.totalorder %s154, %s155
    %p164 = scmp.eq.s32.totalorder %s18, 0
    %p165 = por %p163, %p164
    %p166 = scmp.ne.s32.totalorder %s154, %s155
    %p167 = scmp.eq.s32.totalorder %s19, 1
    %p168 = por %p166, %p167
    %p170 = scmp.ne.s32.totalorder %s155, %s169
    %p171 = scmp.eq.s32.totalorder %s19, 0
    %p172 = por %p170, %p171
    %s173 = ssub.s32 %s13, %s20
    %p174 = scmp.eq.s32.totalorder %s173, 0
    %s176 = sadd.s32 %s175, 1
    %s177 = scalar_select %p174, %s175, %s176
    %p180 = pneg %p174
    %p181 = scmp.eq.s32.totalorder %s13, 1
    %p182 = por %p180, %p181
    %p183 = scmp.ne.s32.totalorder %s175, %s178
    %p184 = scmp.eq.s32.totalorder %s13, 0
    %p185 = por %p183, %p184
    %p186 = scmp.ne.s32.totalorder %s175, %s178
    %p187 = scmp.eq.s32.totalorder %s18, 1
    %p188 = por %p186, %p187
    %p189 = scmp.ne.s32.totalorder %s178, %s179
    %p190 = scmp.eq.s32.totalorder %s18, 0
    %p191 = por %p189, %p190
    %p192 = scmp.ne.s32.totalorder %s178, %s179
    %p193 = scmp.eq.s32.totalorder %s19, 1
    %p194 = por %p192, %p193
    %p196 = scmp.ne.s32.totalorder %s179, %s195
    %p197 = scmp.eq.s32.totalorder %s19, 0
    %p198 = por %p196, %p197
    %p199 = scmp.le.s32.totalorder 1, %s13
    %p200 = scmp.lt.s32.totalorder %s13, 3
    %p201 = pnand %p199, %p200
    %p202 = pneg %p201
    // Predicated region
    $region9: #{scse_forward.1} parent=5 // pred_check
      _
    $region10: #{scse_forward.1} parent=5 // pred_check_branch
      %204 = sbr.rel (%p201) target = $region12
    $region11: #{scse_forward.1} parent=5 // pred_region
      %s205 = ssub.s32 %s13, 1
      // Predicated region
      $region13: #{scse_forward.1} parent=11 // pred_check
        %p206 = pneg %p60
      $region14: #{scse_forward.1} parent=11 // pred_check_branch
        %208 = sbr.rel (%p206) target = $region16
      $region15: #{scse_forward.1} parent=11 // pred_region
        _
      $region16: #{scse_forward.1} parent=11 // pred_fallthru
        _
      // Predicated region
      $region17: #{scse_forward.1} parent=11 // pred_check
        %p209 = pneg %p81
      $region18: #{scse_forward.1} parent=11 // pred_check_branch
        %211 = sbr.rel (%p209) target = $region20
      $region19: #{scse_forward.1} parent=11 // pred_region
        _
      $region20: #{scse_forward.1} parent=11 // pred_fallthru
        _
      // Predicated region
      $region21: #{scse_forward.1} parent=11 // pred_check
        %p212 = pneg %p102
      $region22: #{scse_forward.1} parent=11 // pred_check_branch
        %214 = sbr.rel (%p212) target = $region24
      $region23: #{scse_forward.1} parent=11 // pred_region
        _
      $region24: #{scse_forward.1} parent=11 // pred_fallthru
        _
      // Predicated region
      $region25: #{scse_forward.1} parent=11 // pred_check
        %p215 = pneg %p123
      $region26: #{scse_forward.1} parent=11 // pred_check_branch
        %217 = sbr.rel (%p215) target = $region28
      $region27: #{scse_forward.1} parent=11 // pred_region
        _
      $region28: #{scse_forward.1} parent=11 // pred_fallthru
        _
      // Predicated region
      $region29: #{scse_forward.1} parent=11 // pred_check
        %p218 = pneg %p144
      $region30: #{scse_forward.1} parent=11 // pred_check_branch
        %220 = sbr.rel (%p218) target = $region32
      $region31: #{scse_forward.1} parent=11 // pred_region
        _
      $region32: #{scse_forward.1} parent=11 // pred_fallthru
        _
      // Predicated region
      $region33: #{scse_forward.1} parent=11 // pred_check
        %p221 = pneg %p165
      $region34: #{scse_forward.1} parent=11 // pred_check_branch
        %223 = sbr.rel (%p221) target = $region36
      $region35: #{scse_forward.1} parent=11 // pred_region
        _
      $region36: #{scse_forward.1} parent=11 // pred_fallthru
        _
    $region12: #{scse_forward.1} parent=5 // pred_fallthru
      _
    %p224 = scmp.lt.s32.totalorder %s13, 2
    // Predicated region
    $region37: #{scse_forward.1} parent=5 // pred_check
      %p225 = pneg %p224
    $region38: #{scse_forward.1} parent=5 // pred_check_branch
      %227 = sbr.rel (%p225) target = $region40
    $region39: #{scse_forward.1} parent=5 // pred_region
      // Predicated region
      $region41: #{scse_forward.1} parent=39 // pred_check
        %p228 = pneg %p33
      $region42: #{scse_forward.1} parent=39 // pred_check_branch
        %230 = sbr.rel (%p228) target = $region44
      $region43: #{scse_forward.1} parent=39 // pred_region
        %p231 = scmp.lt.s32.totalorder %s13, 1
        %s232 = scalar_select %p231, %s13, 1
        %s233 = smul.addr %s232, 8
        %s234 = smul.addr %s233, 8
        %s235 = scalar_lea.vmem %s0, %s234
      $region44: #{scse_forward.1} parent=39 // pred_fallthru
        _
    $region40: #{scse_forward.1} parent=5 // pred_fallthru
      _
    %p236 = scmp.le.s32.totalorder 1, %s13
    %p237 = scmp.lt.s32.totalorder %s13, 3
    %p238 = pnand %p236, %p237
    %p239 = pneg %p238
    // Predicated region
    $region45: #{scse_forward.1} parent=5 // pred_check
      _
    $region46: #{scse_forward.1} parent=5 // pred_check_branch
      %241 = sbr.rel (%p238) target = $region48
    $region47: #{scse_forward.1} parent=5 // pred_region
      %s242 = ssub.s32 %s13, 1
      %p243 = scmp.lt.s32.totalorder %s18, 1
      %s244 = scalar_select %p243, %s18, 1
      %s245 = smul.addr %s244, 8
      %s246 = smul.addr %s245, 8
      %s247 = scalar_lea.vmem %s0, %s246
      %p248 = pneg %p39
      %p249 = pneg %p36
      %p250 = pneg %p60
      %p251 = pneg %p57
      %p252 = pneg %p81
      %p253 = pneg %p78
      %p254 = pneg %p102
      %p255 = pneg %p99
      %p256 = pneg %p123
      %p257 = pneg %p120
      %p258 = pneg %p144
      %p259 = pneg %p141
      %p260 = pneg %p165
      %p261 = pneg %p162
      %p262 = pneg %p191
      %p263 = pneg %p188
      %p264 = scmp.lt.s32.totalorder %s18, 1
      %s265 = scalar_select %p264, %s18, 1
      %s266 = smul.addr %s265, 8
      %s267 = smul.addr %s266, 8
      %s268 = scalar_lea.vmem %s7, %s267
      %p269 = scmp.lt.s32.totalorder %s18, 1
      %s270 = scalar_select %p269, %s18, 1
      %s271 = smul.addr %s270, 8
      %s272 = smul.addr %s271, 8
      %s273 = scalar_lea.vmem %s0, %s272
      %p274 = scmp.lt.s32.totalorder %s18, 1
      %s275 = scalar_select %p274, %s18, 1
      %s276 = smul.addr %s275, 8
      %s277 = smul.addr %s276, 8
      %s278 = scalar_lea.vmem %s7, %s277
      %v279 = vld [vmem:[%s273] sm:$0xff]
      %v280 = vld [vmem:[%s273 + $0x8] sm:$0xff]
      %v281 = vld [vmem:[%s273 + $0x10] sm:$0xff]
      %v282 = vld [vmem:[%s273 + $0x18] sm:$0xff]
      %v283 = vld [vmem:[%s273 + $0x20] sm:$0xff]
      %v284 = vld [vmem:[%s273 + $0x28] sm:$0xff]
      %v285 = vld [vmem:[%s273 + $0x30] sm:$0xff]
      %v286 = vld [vmem:[%s273 + $0x38] sm:$0xff]
      %287 = vmatprep.subr.mxu0 0.0
      %288 = vmatpush1.msra.mxu0 1.0
      %289 = vmatprep.subr.mxu0 0.0
      %290 = vmatpush1.msra.mxu0 1.0
      %291 = vmatprep.subr.mxu0 0.0
      %292 = vmatpush1.msra.mxu0 1.0
      %293 = vmatprep.subr.mxu0 0.0
      %294 = vmatpush1.msra.mxu0 1.0
      %295 = vmatprep.subr.mxu0 0.0
      %296 = vmatpush1.msra.mxu0 1.0
      %297 = vmatprep.subr.mxu0 0.0
      %298 = vmatpush1.msra.mxu0 1.0
      %299 = vmatprep.subr.mxu0 0.0
      %300 = vmatpush1.msra.mxu0 1.0
      %301 = vmatprep.subr.mxu0 0.0
      %302 = vmatpush1.msra.mxu0 1.0
      %303 = vmatprep.subr.mxu0 0.0
      %304 = vmatpush1.msra.mxu0 1.0
      %305 = vmatprep.subr.mxu0 0.0
      %306 = vmatpush1.msra.mxu0 1.0
      %307 = vmatprep.subr.mxu0 0.0
      %308 = vmatpush1.msra.mxu0 1.0
      %309 = vmatprep.subr.mxu0 0.0
      %310 = vmatpush1.msra.mxu0 1.0
      %311 = vmatprep.subr.mxu0 0.0
      %312 = vmatpush1.msra.mxu0 1.0
      %313 = vmatprep.subr.mxu0 0.0
      %314 = vmatpush1.msra.mxu0 1.0
      %315 = vmatprep.subr.mxu0 0.0
      %316 = vmatpush1.msra.mxu0 1.0
      %317 = vmatprep.subr.mxu0 0.0
      %318 = vmatpush1.msra.mxu0 1.0
      %319 = vmatprep.subr.mxu0 0.0
      %320 = vmatpush1.msra.mxu0 1.0
      %321 = vmatprep.subr.mxu0 0.0
      %322 = vmatpush1.msra.mxu0 1.0
      %323 = vmatprep.subr.mxu0 0.0
      %324 = vmatpush1.msra.mxu0 1.0
      %325 = vmatprep.subr.mxu0 0.0
      %326 = vmatpush1.msra.mxu0 1.0
      %327 = vmatprep.subr.mxu0 0.0
      %328 = vmatpush1.msra.mxu0 1.0
      %329 = vmatprep.subr.mxu0 0.0
      %330 = vmatpush1.msra.mxu0 1.0
      %331 = vmatprep.subr.mxu0 0.0
      %332 = vmatpush1.msra.mxu0 1.0
      %333 = vmatprep.subr.mxu0 0.0
      %334 = vmatpush1.msra.mxu0 1.0
      %335 = vmatprep.subr.mxu0 0.0
      %336 = vmatpush1.msra.mxu0 1.0
      %337 = vmatprep.subr.mxu0 0.0
      %338 = vmatpush1.msra.mxu0 1.0
      %339 = vmatprep.subr.mxu0 0.0
      %340 = vmatpush1.msra.mxu0 1.0
      %341 = vmatprep.subr.mxu0 0.0
      %342 = vmatpush1.msra.mxu0 1.0
      %343 = vmatprep.subr.mxu0 0.0
      %344 = vmatpush1.msra.mxu0 1.0
      %345 = vmatprep.subr.mxu0 0.0
      %346 = vmatpush1.msra.mxu0 1.0
      %347 = vmatprep.subr.mxu0 0.0
      %348 = vmatpush1.msra.mxu0 1.0
      %349 = vmatprep.subr.mxu0 0.0
      %350 = vmatpush1.msra.mxu0 1.0
      %351 = vmatprep.mubr.f32.mxu0 %v280
      %352 = vmatmul.mubr.f32.gmra.mrb[0].mxu0 %v279
      %v353 = vpop.f32.mrb[0].mxu0
      %v354 = vadd.f32 0.0, %v353
      %v355 = vpop.f32.mrb[0].mxu0
      %356 = vmatprep.mubr.f32.mxu0 %v282
      %357 = vmatmul.mubr.f32.gmra.mrb[0].mxu0 %v281
      %v358 = vpop.f32.mrb[0].mxu0
      %v359 = vadd.f32 0.0, %v358
      %v360 = vpop.f32.mrb[0].mxu0
      %361 = vmatprep.mubr.f32.mxu0 %v284
      %362 = vmatmul.mubr.f32.gmra.mrb[0].mxu0 %v283
      %v363 = vpop.f32.mrb[0].mxu0
      %v364 = vadd.f32 0.0, %v363
      %v365 = vpop.f32.mrb[0].mxu0
      %366 = vmatprep.mubr.f32.mxu0 %v286
      %367 = vmatmul.mubr.f32.gmra.mrb[0].mxu0 %v285
      %v368 = vpop.f32.mrb[0].mxu0
      %v369 = vadd.f32 0.0, %v368
      %v370 = vpop.f32.mrb[0].mxu0
      %371 = vdwg.mxu0
      %v372 = vmul.f32 %v354, 0.00390625
      %v373 = vmul.f32 %v359, 0.00390625
      %v374 = vmul.f32 %v364, 0.00390625
      %v375 = vmul.f32 %v369, 0.00390625
      %v376 = vld [vmem:[%s1] sm:$0x3]
      %v377 = vld [vmem:[%s2] sm:$0x3]
      %vm378 = vcmask 261120
      %v380 = vsel %vm378, %v376, 0
      %382 = vmatprep.subr.mxu0 0.0
      %383 = vmatpush1.msra.mxu0 %v372
      %384 = vmatprep.subr.mxu0 0.0
      %385 = vmatpush1.msra.mxu0 %v373
      %386 = vmatprep.subr.mxu0 0.0
      %387 = vmatpush1.msra.mxu0 %v374
      %388 = vmatprep.subr.mxu0 0.0
      %389 = vmatpush1.msra.mxu0 %v375
      %390 = vmatprep.subr.mxu0 0.0
      %391 = vmatpush1.msra.mxu0 0.0
      %392 = vmatprep.subr.mxu0 0.0
      %393 = vmatpush1.msra.mxu0 0.0
      %394 = vmatprep.subr.mxu0 0.0
      %395 = vmatpush1.msra.mxu0 0.0
      %396 = vmatprep.subr.mxu0 0.0
      %397 = vmatpush1.msra.mxu0 0.0
      %398 = vmatprep.subr.mxu0 0.0
      %399 = vmatpush1.msra.mxu0 0.0
      %400 = vmatprep.subr.mxu0 0.0
      %401 = vmatpush1.msra.mxu0 0.0
      %402 = vmatprep.subr.mxu0 0.0
      %403 = vmatpush1.msra.mxu0 0.0
      %404 = vmatprep.subr.mxu0 0.0
      %405 = vmatpush1.msra.mxu0 0.0
      %406 = vmatprep.subr.mxu0 0.0
      %407 = vmatpush1.msra.mxu0 0.0
      %408 = vmatprep.subr.mxu0 0.0
      %409 = vmatpush1.msra.mxu0 0.0
      %410 = vmatprep.subr.mxu0 0.0
      %411 = vmatpush1.msra.mxu0 0.0
      %412 = vmatprep.subr.mxu0 0.0
      %413 = vmatpush1.msra.mxu0 0.0
      %414 = vmatprep.subr.mxu0 0.0
      %415 = vmatpush1.msra.mxu0 0.0
      %416 = vmatprep.subr.mxu0 0.0
      %417 = vmatpush1.msra.mxu0 0.0
      %418 = vmatprep.subr.mxu0 0.0
      %419 = vmatpush1.msra.mxu0 0.0
      %420 = vmatprep.subr.mxu0 0.0
      %421 = vmatpush1.msra.mxu0 0.0
      %422 = vmatprep.subr.mxu0 0.0
      %423 = vmatpush1.msra.mxu0 0.0
      %424 = vmatprep.subr.mxu0 0.0
      %425 = vmatpush1.msra.mxu0 0.0
      %426 = vmatprep.subr.mxu0 0.0
      %427 = vmatpush1.msra.mxu0 0.0
      %428 = vmatprep.subr.mxu0 0.0
      %429 = vmatpush1.msra.mxu0 0.0
      %430 = vmatprep.subr.mxu0 0.0
      %431 = vmatpush1.msra.mxu0 0.0
      %432 = vmatprep.subr.mxu0 0.0
      %433 = vmatpush1.msra.mxu0 0.0
      %434 = vmatprep.subr.mxu0 0.0
      %435 = vmatpush1.msra.mxu0 0.0
      %436 = vmatprep.subr.mxu0 0.0
      %437 = vmatpush1.msra.mxu0 0.0
      %438 = vmatprep.subr.mxu0 0.0
      %439 = vmatpush1.msra.mxu0 0.0
      %440 = vmatprep.subr.mxu0 0.0
      %441 = vmatpush1.msra.mxu0 0.0
      %442 = vmatprep.subr.mxu0 0.0
      %443 = vmatpush1.msra.mxu0 0.0
      %444 = vmatprep.subr.mxu0 0.0
      %445 = vmatpush1.msra.mxu0 0.0
      %446 = vmatprep.mubr.f32.mxu0 0.0
      %447 = vmatmul.mubr.f32.gmra.mrb[0].mxu0 %v380
      %v448 = vpop.f32.mrb[0].mxu0
      %v449 = vadd.f32 %v377, %v448
      %v450 = vpop.f32.mrb[0].mxu0
      %451 = vdwg.mxu0
      %v452 = vmax.f32 %v449, 0.0
      %v453 = vld [vmem:[%s3] sm:$0xff]
      %v454 = vld [vmem:[%s3 + $0x8] sm:$0xff]
      %v455 = vld [vmem:[%s3 + $0x10] sm:$0xff]
      %v456 = vld [vmem:[%s3 + $0x18] sm:$0xff]
      %v457 = vld [vmem:[%s4] sm:$0xff]
      %v458 = vld [vmem:[%s4 + $0x8] sm:$0xff]
      %v459 = vld [vmem:[%s4 + $0x10] sm:$0xff]
      %v460 = vld [vmem:[%s4 + $0x18] sm:$0xff]
      %vm461 = vcmask 15360
      %v463 = vsel %vm461, %v453, 0
      %v466 = vsel %vm461, %v454, 0
      %v469 = vsel %vm461, %v455, 0
      %v472 = vsel %vm461, %v456, 0
      %vm474 = vcmask 1041408
      %v476 = vsel %vm474, %v452, 0
      %478 = vmatprep.subr.mxu0 0.0
      %479 = vmatpush1.msra.mxu0 %v476
      %480 = vmatprep.subr.mxu0 0.0
      %481 = vmatpush1.msra.mxu0 0.0
      %482 = vmatprep.subr.mxu0 0.0
      %483 = vmatpush1.msra.mxu0 0.0
      %484 = vmatprep.subr.mxu0 0.0
      %485 = vmatpush1.msra.mxu0 0.0
      %486 = vmatprep.subr.mxu0 0.0
      %487 = vmatpush1.msra.mxu0 0.0
      %488 = vmatprep.subr.mxu0 0.0
      %489 = vmatpush1.msra.mxu0 0.0
      %490 = vmatprep.subr.mxu0 0.0
      %491 = vmatpush1.msra.mxu0 0.0
      %492 = vmatprep.subr.mxu0 0.0
      %493 = vmatpush1.msra.mxu0 0.0
      %494 = vmatprep.subr.mxu0 0.0
      %495 = vmatpush1.msra.mxu0 0.0
      %496 = vmatprep.subr.mxu0 0.0
      %497 = vmatpush1.msra.mxu0 0.0
      %498 = vmatprep.subr.mxu0 0.0
      %499 = vmatpush1.msra.mxu0 0.0
      %500 = vmatprep.subr.mxu0 0.0
      %501 = vmatpush1.msra.mxu0 0.0
      %502 = vmatprep.subr.mxu0 0.0
      %503 = vmatpush1.msra.mxu0 0.0
      %504 = vmatprep.subr.mxu0 0.0
      %505 = vmatpush1.msra.mxu0 0.0
      %506 = vmatprep.subr.mxu0 0.0
      %507 = vmatpush1.msra.mxu0 0.0
      %508 = vmatprep.subr.mxu0 0.0
      %509 = vmatpush1.msra.mxu0 0.0
      %510 = vmatprep.subr.mxu0 0.0
      %511 = vmatpush1.msra.mxu0 0.0
      %512 = vmatprep.subr.mxu0 0.0
      %513 = vmatpush1.msra.mxu0 0.0
      %514 = vmatprep.subr.mxu0 0.0
      %515 = vmatpush1.msra.mxu0 0.0
      %516 = vmatprep.subr.mxu0 0.0
      %517 = vmatpush1.msra.mxu0 0.0
      %518 = vmatprep.subr.mxu0 0.0
      %519 = vmatpush1.msra.mxu0 0.0
      %520 = vmatprep.subr.mxu0 0.0
      %521 = vmatpush1.msra.mxu0 0.0
      %522 = vmatprep.subr.mxu0 0.0
      %523 = vmatpush1.msra.mxu0 0.0
      %524 = vmatprep.subr.mxu0 0.0
      %525 = vmatpush1.msra.mxu0 0.0
      %526 = vmatprep.subr.mxu0 0.0
      %527 = vmatpush1.msra.mxu0 0.0
      %528 = vmatprep.subr.mxu0 0.0
      %529 = vmatpush1.msra.mxu0 0.0
      %530 = vmatprep.subr.mxu0 0.0
      %531 = vmatpush1.msra.mxu0 0.0
      %532 = vmatprep.subr.mxu0 0.0
      %533 = vmatpush1.msra.mxu0 0.0
      %534 = vmatprep.subr.mxu0 0.0
      %535 = vmatpush1.msra.mxu0 0.0
      %536 = vmatprep.subr.mxu0 0.0
      %537 = vmatpush1.msra.mxu0 0.0
      %538 = vmatprep.subr.mxu0 0.0
      %539 = vmatpush1.msra.mxu0 0.0
      %540 = vmatprep.subr.mxu0 0.0
      %541 = vmatpush1.msra.mxu0 0.0
      %542 = vmatprep.mubr.f32.mxu0 0.0
      %543 = vmatmul.mubr.f32.gmra.mrb[0].mxu0 %v463
      %v544 = vpop.f32.mrb[0].mxu0
      %v545 = vadd.f32 %v457, %v544
      %v546 = vpop.f32.mrb[0].mxu0
      %547 = vmatprep.mubr.f32.mxu0 0.0
      %548 = vmatmul.mubr.f32.gmra.mrb[0].mxu0 %v466
      %v549 = vpop.f32.mrb[0].mxu0
      %v550 = vadd.f32 %v458, %v549
      %v551 = vpop.f32.mrb[0].mxu0
      %552 = vmatprep.mubr.f32.mxu0 0.0
      %553 = vmatmul.mubr.f32.gmra.mrb[0].mxu0 %v469
      %v554 = vpop.f32.mrb[0].mxu0
      %v555 = vadd.f32 %v459, %v554
      %v556 = vpop.f32.mrb[0].mxu0
      %557 = vmatprep.mubr.f32.mxu0 0.0
      %558 = vmatmul.mubr.f32.gmra.mrb[0].mxu0 %v472
      %v559 = vpop.f32.mrb[0].mxu0
      %v560 = vadd.f32 %v460, %v559
      %v561 = vpop.f32.mrb[0].mxu0
      %562 = vdwg.mxu0
      %v563 = vxor.u32 %v545, 2147483648
      %v564 = vxor.u32 %v550, 2147483648
      %v565 = vxor.u32 %v555, 2147483648
      %v566 = vxor.u32 %v560, 2147483648
      %v567 = vmul.f32 %v563, 1.442695
      %v568 = vpow.pop %v567
      %v569 = vmul.f32 %v564, 1.442695
      %v570 = vpow.pop %v569
      %v571 = vmul.f32 %v565, 1.442695
      %v572 = vpow.pop %v571
      %v573 = vmul.f32 %v566, 1.442695
      %v574 = vpow.pop %v573
      %v575 = vadd.f32 %v568, 1.0
      %v576 = vadd.f32 %v570, 1.0
      %v577 = vadd.f32 %v572, 1.0
      %v578 = vadd.f32 %v574, 1.0
      %v579 = vrcp.pop %v575
      %v580 = vmul.f32 1.0, %v579
      %v581 = vrcp.pop %v576
      %v582 = vmul.f32 1.0, %v581
      %v583 = vrcp.pop %v577
      %v584 = vmul.f32 1.0, %v583
      %v585 = vrcp.pop %v578
      %v586 = vmul.f32 1.0, %v585
      %v587 = vld [vmem:[%s5] sm:$0xff]
      %v588 = vld [vmem:[%s5 + $0x8] sm:$0xff]
      %v589 = vld [vmem:[%s5 + $0x10] sm:$0xff]
      %v590 = vld [vmem:[%s5 + $0x18] sm:$0xff]
      %v591 = vld [vmem:[%s6] sm:$0xff]
      %v592 = vld [vmem:[%s6 + $0x8] sm:$0xff]
      %v593 = vld [vmem:[%s6 + $0x10] sm:$0xff]
      %v594 = vld [vmem:[%s6 + $0x18] sm:$0xff]
      %596 = vset.pattern.permute.xlu0 0
      %597 = vperm.xlu0 %596, %v591
      %v598 = vpop.permute.xlu0 %597
      %601 = vset.pattern.permute.xlu0 0
      %602 = vperm.xlu0 %601, %v592
      %v603 = vpop.permute.xlu0 %602
      %606 = vset.pattern.permute.xlu0 0
      %607 = vperm.xlu0 %606, %v593
      %v608 = vpop.permute.xlu0 %607
      %611 = vset.pattern.permute.xlu0 0
      %612 = vperm.xlu0 %611, %v594
      %v613 = vpop.permute.xlu0 %612
      %v616 = vsel %vm378, %v587, 0
      %v619 = vsel %vm378, %v588, 0
      %v622 = vsel %vm378, %v589, 0
      %v625 = vsel %vm378, %v590, 0
      %627 = vmatprep.subr.mxu0 %v280
      %628 = vmatpush1.msra.mxu0 %v279
      %629 = vmatprep.subr.mxu0 %v282
      %630 = vmatpush1.msra.mxu0 %v281
      %631 = vmatprep.subr.mxu0 %v284
      %632 = vmatpush1.msra.mxu0 %v283
      %633 = vmatprep.subr.mxu0 %v286
      %634 = vmatpush1.msra.mxu0 %v285
      %635 = vmatprep.subr.mxu0 0.0
      %636 = vmatpush1.msra.mxu0 0.0
      %637 = vmatprep.subr.mxu0 0.0
      %638 = vmatpush1.msra.mxu0 0.0
      %639 = vmatprep.subr.mxu0 0.0
      %640 = vmatpush1.msra.mxu0 0.0
      %641 = vmatprep.subr.mxu0 0.0
      %642 = vmatpush1.msra.mxu0 0.0
      %643 = vmatprep.subr.mxu0 0.0
      %644 = vmatpush1.msra.mxu0 0.0
      %645 = vmatprep.subr.mxu0 0.0
      %646 = vmatpush1.msra.mxu0 0.0
      %647 = vmatprep.subr.mxu0 0.0
      %648 = vmatpush1.msra.mxu0 0.0
      %649 = vmatprep.subr.mxu0 0.0
      %650 = vmatpush1.msra.mxu0 0.0
      %651 = vmatprep.subr.mxu0 0.0
      %652 = vmatpush1.msra.mxu0 0.0
      %653 = vmatprep.subr.mxu0 0.0
      %654 = vmatpush1.msra.mxu0 0.0
      %655 = vmatprep.subr.mxu0 0.0
      %656 = vmatpush1.msra.mxu0 0.0
      %657 = vmatprep.subr.mxu0 0.0
      %658 = vmatpush1.msra.mxu0 0.0
      %659 = vmatprep.subr.mxu0 0.0
      %660 = vmatpush1.msra.mxu0 0.0
      %661 = vmatprep.subr.mxu0 0.0
      %662 = vmatpush1.msra.mxu0 0.0
      %663 = vmatprep.subr.mxu0 0.0
      %664 = vmatpush1.msra.mxu0 0.0
      %665 = vmatprep.subr.mxu0 0.0
      %666 = vmatpush1.msra.mxu0 0.0
      %667 = vmatprep.subr.mxu0 0.0
      %668 = vmatpush1.msra.mxu0 0.0
      %669 = vmatprep.subr.mxu0 0.0
      %670 = vmatpush1.msra.mxu0 0.0
      %671 = vmatprep.subr.mxu0 0.0
      %672 = vmatpush1.msra.mxu0 0.0
      %673 = vmatprep.subr.mxu0 0.0
      %674 = vmatpush1.msra.mxu0 0.0
      %675 = vmatprep.subr.mxu0 0.0
      %676 = vmatpush1.msra.mxu0 0.0
      %677 = vmatprep.subr.mxu0 0.0
      %678 = vmatpush1.msra.mxu0 0.0
      %679 = vmatprep.subr.mxu0 0.0
      %680 = vmatpush1.msra.mxu0 0.0
      %681 = vmatprep.subr.mxu0 0.0
      %682 = vmatpush1.msra.mxu0 0.0
      %683 = vmatprep.subr.mxu0 0.0
      %684 = vmatpush1.msra.mxu0 0.0
      %685 = vmatprep.subr.mxu0 0.0
      %686 = vmatpush1.msra.mxu0 0.0
      %687 = vmatprep.subr.mxu0 0.0
      %688 = vmatpush1.msra.mxu0 0.0
      %689 = vmatprep.subr.mxu0 0.0
      %690 = vmatpush1.msra.mxu0 0.0
      %691 = vmatprep.mubr.f32.mxu0 0.0
      %692 = vmatmul.mubr.f32.gmra.mrb[0].mxu0 %v616
      %v693 = vpop.f32.mrb[0].mxu0
      %v694 = vadd.f32 %v598, %v693
      %v695 = vpop.f32.mrb[0].mxu0
      %v696 = vadd.f32 %v598, %v695
      %697 = vmatprep.mubr.f32.mxu0 0.0
      %698 = vmatmul.mubr.f32.gmra.mrb[0].mxu0 %v619
      %v699 = vpop.f32.mrb[0].mxu0
      %v700 = vadd.f32 %v603, %v699
      %v701 = vpop.f32.mrb[0].mxu0
      %v702 = vadd.f32 %v603, %v701
      %703 = vmatprep.mubr.f32.mxu0 0.0
      %704 = vmatmul.mubr.f32.gmra.mrb[0].mxu0 %v622
      %v705 = vpop.f32.mrb[0].mxu0
      %v706 = vadd.f32 %v608, %v705
      %v707 = vpop.f32.mrb[0].mxu0
      %v708 = vadd.f32 %v608, %v707
      %709 = vmatprep.mubr.f32.mxu0 0.0
      %710 = vmatmul.mubr.f32.gmra.mrb[0].mxu0 %v625
      %v711 = vpop.f32.mrb[0].mxu0
      %v712 = vadd.f32 %v613, %v711
      %v713 = vpop.f32.mrb[0].mxu0
      %v714 = vadd.f32 %v613, %v713
      %715 = vdwg.mxu0
      %v716 = vxor.u32 %v694, 2147483648
      %v717 = vxor.u32 %v696, 2147483648
      %v718 = vxor.u32 %v700, 2147483648
      %v719 = vxor.u32 %v702, 2147483648
      %v720 = vxor.u32 %v706, 2147483648
      %v721 = vxor.u32 %v708, 2147483648
      %v722 = vxor.u32 %v712, 2147483648
      %v723 = vxor.u32 %v714, 2147483648
      %v724 = vmul.f32 %v716, 1.442695
      %v725 = vpow.pop %v724
      %v726 = vmul.f32 %v717, 1.442695
      %v727 = vpow.pop %v726
      %v728 = vmul.f32 %v718, 1.442695
      %v729 = vpow.pop %v728
      %v730 = vmul.f32 %v719, 1.442695
      %v731 = vpow.pop %v730
      %v732 = vmul.f32 %v720, 1.442695
      %v733 = vpow.pop %v732
      %v734 = vmul.f32 %v721, 1.442695
      %v735 = vpow.pop %v734
      %v736 = vmul.f32 %v722, 1.442695
      %v737 = vpow.pop %v736
      %v738 = vmul.f32 %v723, 1.442695
      %v739 = vpow.pop %v738
      %v740 = vadd.f32 %v725, 1.0
      %v741 = vadd.f32 %v727, 1.0
      %v742 = vadd.f32 %v729, 1.0
      %v743 = vadd.f32 %v731, 1.0
      %v744 = vadd.f32 %v733, 1.0
      %v745 = vadd.f32 %v735, 1.0
      %v746 = vadd.f32 %v737, 1.0
      %v747 = vadd.f32 %v739, 1.0
      %v748 = vrcp.pop %v740
      %v749 = vmul.f32 1.0, %v748
      %v750 = vrcp.pop %v741
      %v751 = vmul.f32 1.0, %v750
      %v752 = vrcp.pop %v742
      %v753 = vmul.f32 1.0, %v752
      %v754 = vrcp.pop %v743
      %v755 = vmul.f32 1.0, %v754
      %v756 = vrcp.pop %v744
      %v757 = vmul.f32 1.0, %v756
      %v758 = vrcp.pop %v745
      %v759 = vmul.f32 1.0, %v758
      %v760 = vrcp.pop %v746
      %v761 = vmul.f32 1.0, %v760
      %v762 = vrcp.pop %v747
      %v763 = vmul.f32 1.0, %v762
      %765 = vset.pattern.permute.xlu0 0
      %766 = vperm.xlu0 %765, %v580
      %v767 = vpop.permute.xlu0 %766
      %770 = vset.pattern.permute.xlu0 0
      %771 = vperm.xlu0 %770, %v582
      %v772 = vpop.permute.xlu0 %771
      %775 = vset.pattern.permute.xlu0 0
      %776 = vperm.xlu0 %775, %v584
      %v777 = vpop.permute.xlu0 %776
      %780 = vset.pattern.permute.xlu0 0
      %781 = vperm.xlu0 %780, %v586
      %v782 = vpop.permute.xlu0 %781
      %v784 = vadd.f32 %v767, %v749
      %v785 = vadd.f32 %v767, %v751
      %v786 = vadd.f32 %v772, %v753
      %v787 = vadd.f32 %v772, %v755
      %v788 = vadd.f32 %v777, %v757
      %v789 = vadd.f32 %v777, %v759
      %v790 = vadd.f32 %v782, %v761
      %v791 = vadd.f32 %v782, %v763
      %v792 = vmul.f32 %v279, %v784
      %v793 = vmul.f32 %v280, %v785
      %v794 = vmul.f32 %v281, %v786
      %v795 = vmul.f32 %v282, %v787
      %v796 = vmul.f32 %v283, %v788
      %v797 = vmul.f32 %v284, %v789
      %v798 = vmul.f32 %v285, %v790
      %v799 = vmul.f32 %v286, %v791
      %800 = vst [vmem:[%s278] sm:$0xff] %v792
      %801 = vst [vmem:[%s278 + $0x8] sm:$0xff] %v793
      %802 = vst [vmem:[%s278 + $0x10] sm:$0xff] %v794
      %803 = vst [vmem:[%s278 + $0x18] sm:$0xff] %v795
      %804 = vst [vmem:[%s278 + $0x20] sm:$0xff] %v796
      %805 = vst [vmem:[%s278 + $0x28] sm:$0xff] %v797
      %806 = vst [vmem:[%s278 + $0x30] sm:$0xff] %v798
      %807 = vst [vmem:[%s278 + $0x38] sm:$0xff] %v799
      %p808 = scmp.lt.s32.totalorder %s18, 1
      %s809 = scalar_select %p808, %s18, 1
      %s810 = smul.addr %s809, 8
      %s811 = smul.addr %s810, 8
      %s812 = scalar_lea.vmem %s7, %s811
      // Predicated region
      $region49: #{scse_forward.1} parent=47 // pred_check
        %p813 = pneg %p188
      $region50: #{scse_forward.1} parent=47 // pred_check_branch
        %815 = sbr.rel (%p813) target = $region52
      $region51: #{scse_forward.1} parent=47 // pred_region
        _
      $region52: #{scse_forward.1} parent=47 // pred_fallthru
        _
    $region48: #{scse_forward.1} parent=5 // pred_fallthru
      _
    %p816 = scmp.le.s32.totalorder 2, %s13
    // Predicated region
    $region53: #{scse_forward.1} parent=5 // pred_check
      %p817 = pneg %p816
    $region54: #{scse_forward.1} parent=5 // pred_check_branch
      %819 = sbr.rel (%p817) target = $region56
    $region55: #{scse_forward.1} parent=5 // pred_region
      %s820 = ssub.s32 %s13, 2
      // Predicated region
      $region57: #{scse_forward.1} parent=55 // pred_check
        %p821 = pneg %p194
      $region58: #{scse_forward.1} parent=55 // pred_check_branch
        %823 = sbr.rel (%p821) target = $region60
      $region59: #{scse_forward.1} parent=55 // pred_region
        %p824 = scmp.lt.s32.totalorder %s19, 1
        %s825 = scalar_select %p824, %s19, 1
        %s826 = smul.addr %s825, 8
        %s827 = smul.addr %s826, 8
        %s828 = scalar_lea.vmem %s7, %s827
      $region60: #{scse_forward.1} parent=55 // pred_fallthru
        _
    $region56: #{scse_forward.1} parent=5 // pred_fallthru
      _
  $region6: #{scse_forward.1} parent=0 // loop_footer
    %s17 = sadd.s32 1, %s13
  $region7: #{scse_forward.1} parent=0 // loop_footer_branch
    %12 = sbr.rel target = $region3
  $region8: #{scse_forward.1} parent=0 // loop_exit
    _

</llo_original>
